<compile_context>
chip_gen: v7x
topology: tpu7x:2x2x1
jax: 0.10.0
libtpu: 0.0.40
codegen_flags: <defaults>
</compile_context>

<pallas_src>
import itertools
import math

import jax
import jax.numpy as jnp
import numpy as np
from jax.experimental import pallas as pl
from jax.experimental.pallas import tpu as pltpu


def _round_up(x, m):
    return ((x + m - 1) // m) * m


def _spatial_tiling(s, max_tile_s):
    """Lane-aligned spatial tile; S is zero-padded up to tile_s * n_k."""
    max_t = max(128, (max_tile_s // 128) * 128)
    n_k = -(-s // max_t)                       # ceil-div: number of spatial steps
    tile_s = _round_up(-(-s // n_k), 128)      # balanced tiles, minimal padding
    return tile_s, tile_s * n_k, n_k


def _batch_folding(b, n, max_rows=16):
    """How many batches (tB) to fold per block so tB*N fills the sublanes."""
    base = 8 // math.gcd(n, 8)                 # smallest tB with (tB*N) % 8 == 0
    if base <= b:
        tb = base
        while tb * 2 <= b and tb * 2 * n <= max_rows:
            tb *= 2
        return tb, _round_up(b, tb)
    # Not enough batches to fill 8 sublanes: one block covers all of B
    # (block dim == full array dim, so the (8,128) rule is still satisfied).
    return b, b


def _pairwise_call(pred2d, tgt2d, *, n_inst, s_true, tile_s, n_k, tb, b_pad):
    """pred2d/tgt2d: (b_pad*n_inst, s_pad).  Returns (nb, R, R) IoU / mean-BCE
    matrices over the folded rows; per-batch (N, N) blocks sit on the
    block-diagonal and are extracted by the caller."""
    rows = tb * n_inst                       # rows per block (dense sublanes)
    nb = b_pad // tb
    inv_s = float(1.0 / s_true)

    def kernel(pred_ref, tgt_ref, iou_ref, bce_ref,
               acc_inter, acc_lp, acc_l1mp, acc_tsum, acc_psum, acc_lsum):
        k = pl.program_id(1)

        @pl.when(k == 0)
        def _init():
            acc_inter[...] = jnp.zeros_like(acc_inter)
            acc_lp[...] = jnp.zeros_like(acc_lp)
            acc_l1mp[...] = jnp.zeros_like(acc_l1mp)
            acc_tsum[...] = jnp.zeros_like(acc_tsum)
            acc_psum[...] = jnp.zeros_like(acc_psum)
            acc_lsum[...] = jnp.zeros_like(acc_lsum)

        dn = (((1,), (1,)), ((), ()))        # contract last dims of both operands

        p = pred_ref[...].astype(jnp.float32)        # (rows, tile_s) probs
        t = tgt_ref[...].astype(jnp.float32)         # (rows, tile_s) binary
        pb = (p > 0.5).astype(jnp.float32)           # exact binarization (f32 p)
        # TODO(synk): jnp.log1p(-p) would be marginally closer to torch for
        # small p; jnp.log(1 - p) kept because its Mosaic lowering is known-good.
        log_p = jnp.maximum(jnp.log(p), -100.0)      # torch BCELoss clamp
        log_1mp = jnp.maximum(jnp.log(1.0 - p), -100.0)
        ones = jnp.ones((1, tile_s), jnp.float32)

        # --- IoU pieces (MXU ~idle at these output widths; f32 dots are fine) ---
        acc_inter[...] += jax.lax.dot_general(
            t, pb, dn, preferred_element_type=jnp.float32)          # (rows, rows)
        acc_psum[...] += jax.lax.dot_general(
            ones, pb, dn, preferred_element_type=jnp.float32)       # (1, rows)
        acc_tsum[...] += jnp.sum(t, axis=-1, keepdims=True)         # (rows, 1)

        # --- BCE pieces: bce = -(t@log_p - t@log_1mp + colsum(log_1mp)) / S ---
        acc_lp[...] += jax.lax.dot_general(
            t, log_p, dn, preferred_element_type=jnp.float32)       # (rows, rows)
        acc_l1mp[...] += jax.lax.dot_general(
            t, log_1mp, dn, preferred_element_type=jnp.float32)     # (rows, rows)
        acc_lsum[...] += jax.lax.dot_general(
            ones, log_1mp, dn, preferred_element_type=jnp.float32)  # (1, rows)

        @pl.when(k == pl.num_programs(1) - 1)
        def _finalize():
            inter = acc_inter[...]
            union = acc_tsum[...] + acc_psum[...] - inter     # (rows,1)+(1,rows)
            iou_ref[...] = jnp.where(
                union > 0.0, inter / jnp.maximum(union, 1e-6), 0.0)
            bce_ref[...] = -((acc_lp[...] - acc_l1mp[...]) + acc_lsum[...]) \
                * jnp.float32(inv_s)

    grid_spec = pltpu.PrefetchScalarGridSpec(
        num_scalar_prefetch=0,
        grid=(nb, n_k),
        in_specs=[
            pl.BlockSpec((rows, tile_s), lambda b, k: (b, k)),
            pl.BlockSpec((rows, tile_s), lambda b, k: (b, k)),
        ],
        out_specs=[
            pl.BlockSpec((None, rows, rows), lambda b, k: (b, 0, 0)),
            pl.BlockSpec((None, rows, rows), lambda b, k: (b, 0, 0)),
        ],
        scratch_shapes=[
            pltpu.VMEM((rows, rows), jnp.float32),   # intersection
            pltpu.VMEM((rows, rows), jnp.float32),   # t @ log(p)^T
            pltpu.VMEM((rows, rows), jnp.float32),   # t @ log(1-p)^T
            pltpu.VMEM((rows, 1), jnp.float32),      # sum_s t   (per target row)
            pltpu.VMEM((1, rows), jnp.float32),      # sum_s pb  (per pred col)
            pltpu.VMEM((1, rows), jnp.float32),      # sum_s log(1-p) (per pred col)
        ],
    )
    return pl.pallas_call(
        kernel,
        out_shape=(
            jax.ShapeDtypeStruct((nb, rows, rows), jnp.float32),
            jax.ShapeDtypeStruct((nb, rows, rows), jnp.float32),
        ),
        grid_spec=grid_spec,
        compiler_params=pltpu.CompilerParams(
            dimension_semantics=("parallel", "arbitrary"),
            vmem_limit_bytes=40 * 1024 * 1024),
    )(pred2d, tgt2d)


def pairwise_iou_bce(prediction, target, *, max_tile_s=16384,
                     pred_dtype=jnp.float32, target_dtype=jnp.bfloat16):
    """prediction, target: (B, N, H, W).  Returns (B, N, N) IoU and mean-BCE
    matrices (rows = target instance, cols = predicted instance), float32."""
    B, N, H, W = prediction.shape
    S = H * W
    tile_s, s_pad, n_k = _spatial_tiling(S, max_tile_s)
    tb, b_pad = _batch_folding(B, N)
    # TODO(synk): for B == 1 on v7x (2 TensorCores) the spatial reduction could
    # be split across both cores with a tiny combine epilogue; not implemented.

    pred = prediction.reshape(B, N, S).astype(pred_dtype)
    tgt = target.reshape(B, N, S).astype(target_dtype)
    if s_pad != S or b_pad != B:
        # Zero padding is inert: padded p=0, t=0 contribute 0 to every
        # accumulator (log(0) is clamped and multiplied by t=0; log(1-0)=0),
        # and the final division uses the true S.
        pred = jnp.pad(pred, ((0, b_pad - B), (0, 0), (0, s_pad - S)))
        tgt = jnp.pad(tgt, ((0, b_pad - B), (0, 0), (0, s_pad - S)))
    pred2d = pred.reshape(b_pad * N, s_pad)
    tgt2d = tgt.reshape(b_pad * N, s_pad)

    iou_full, bce_full = _pairwise_call(
        pred2d, tgt2d, n_inst=N, s_true=S,
        tile_s=tile_s, n_k=n_k, tb=tb, b_pad=b_pad)

    # Extract the per-batch (N, N) blocks from the block-diagonal of the
    # folded (tb*N, tb*N) matrices (tiny arrays; plain XLA ops).
    def _extract(full):
        f = full.reshape(b_pad // tb, tb, N, tb, N)
        d = jnp.diagonal(f, axis1=1, axis2=3)          # (nb, N, N, tb)
        return jnp.moveaxis(d, -1, 1).reshape(b_pad, N, N)[:B]

    return _extract(iou_full), _extract(bce_full)


def _hungarian_max(cost):
    # Exact max-total-IoU assignment by permutation search (N is small).
    # TODO(synk): HungarianMatcher source not provided; assumed IoU cost on
    # binarized predictions with matches = (target_row, pred_col, iou).
    n = cost.shape[0]
    best_perm, best_val = None, -np.inf
    for perm in itertools.permutations(range(n)):
        val = sum(cost[r, perm[r]] for r in range(n))
        if val > best_val:
            best_val, best_perm = val, perm
    return [(r, best_perm[r], float(cost[r, best_perm[r]])) for r in range(n)]


def instance_loss(prediction, target, weight=1.0, max_tile_s=16384,
                  pred_dtype=jnp.float32, target_dtype=jnp.bfloat16):
    """prediction, target: (B, N, H, W); prediction in (0, 1), target binary."""
    B = prediction.shape[0]
    iou, bce = pairwise_iou_bce(prediction, target, max_tile_s=max_tile_s,
                                pred_dtype=pred_dtype, target_dtype=target_dtype)
    iou, bce = jax.block_until_ready((iou, bce))
    iou = np.asarray(iou)
    bce = np.asarray(bce)

    loss = 0.0
    for b in range(B):
        for row, col, cost in _hungarian_max(iou[b]):
            if cost < 0.5:
                continue
            loss += float(bce[b, row, col])
    return jnp.float32(weight * loss / B)


if __name__ == "__main__":
    key = jax.random.PRNGKey(0)
    B, N, H, W = 2, 4, 16, 16
    prediction = jax.random.uniform(
        key, (B, N, H, W), dtype=jnp.float32, minval=1e-4, maxval=1.0 - 1e-4)
    # Targets correlated with predictions so some matches pass the IoU >= 0.5 filter.
    target = (prediction > 0.4).astype(jnp.float32)

    # max_tile_s=128 forces the multi-step spatial accumulator path (grid k=2)
    # even at this tiny demo size, exercising init/accumulate/finalize.
    iou, bce = pairwise_iou_bce(prediction, target, max_tile_s=128)
    iou, bce = jax.block_until_ready((iou, bce))
    iou = np.asarray(iou)
    bce = np.asarray(bce)

    # Pure-numpy reference of the two pairwise reductions (loose tolerance: the
    # MXU may run the f32 contractions as bf16 passes).
    S = H * W
    p = np.asarray(prediction, np.float64).reshape(B, N, S)
    t = np.asarray(target, np.float64).reshape(B, N, S)
    pb = (p > 0.5).astype(np.float64)
    inter = np.einsum("bns,bms->bnm", t, pb)
    union = t.sum(-1)[:, :, None] + pb.sum(-1)[:, None, :] - inter
    iou_ref = np.where(union > 0, inter / np.maximum(union, 1e-6), 0.0)
    log_p = np.maximum(np.log(p), -100.0)
    log_1mp = np.maximum(np.log(1.0 - p), -100.0)
    bce_ref = -(np.einsum("bns,bms->bnm", t, log_p)
                + np.einsum("bns,bms->bnm", 1.0 - t, log_1mp)) / S
    np.testing.assert_allclose(iou, iou_ref, rtol=2e-2, atol=2e-2)
    np.testing.assert_allclose(bce, bce_ref, rtol=2e-2, atol=2e-2)

    out = instance_loss(prediction, target, weight=1.0, max_tile_s=128)
    out = jax.block_until_ready(out)
    assert np.isfinite(float(out))
    print("KERNEL_OK")
</pallas_src>

<mosaic_0001>
module attributes {stable_mosaic.version = 11 : i64} {
  func.func @kernel(%arg0: i32, %arg1: i32, %arg2: memref<8x128xf32, #tpu.memory_space<vmem>>, %arg3: memref<8x128xbf16, #tpu.memory_space<vmem>>, %arg4: memref<1x8x8xf32, #tpu.memory_space<vmem>>, %arg5: memref<1x8x8xf32, #tpu.memory_space<vmem>>, %arg6: memref<8x8xf32, #tpu.memory_space<vmem>>, %arg7: memref<8x8xf32, #tpu.memory_space<vmem>>, %arg8: memref<8x8xf32, #tpu.memory_space<vmem>>, %arg9: memref<8x1xf32, #tpu.memory_space<vmem>>, %arg10: memref<1x8xf32, #tpu.memory_space<vmem>>, %arg11: memref<1x8xf32, #tpu.memory_space<vmem>>) attributes {dimension_semantics = [#tpu.dimension_semantics<parallel>, #tpu.dimension_semantics<arbitrary>], iteration_bounds = array<i64: 1, 2>, scalar_prefetch = 0 : i64, scratch_operands = 6 : i64, tpu.core_type = #tpu.core_type<tc>, window_params = [{transform_indices = @transform_0, window_bounds = array<i64: 8, 128>}, {transform_indices = @transform_1, window_bounds = array<i64: 8, 128>}, {transform_indices = @transform_2, window_bounds = array<i64: 1, 8, 8>}, {transform_indices = @transform_3, window_bounds = array<i64: 1, 8, 8>}]} {
    %c0_i32 = arith.constant 0 : i32
    %0 = arith.cmpi eq, %arg1, %c0_i32 : i32
    %1 = arith.extui %0 : i1 to i32
    %c0_i32_0 = arith.constant 0 : i32
    %2 = arith.cmpi ne, %1, %c0_i32_0 : i32
    scf.if %2 {
      %cst_39 = arith.constant 0.000000e+00 : f32
      %47 = vector.broadcast %cst_39 : f32 to vector<8x8xf32>
      %c0_40 = arith.constant 0 : index
      %c0_41 = arith.constant 0 : index
      %48 = vector.load %arg6[%c0_40, %c0_41] : memref<8x8xf32, #tpu.memory_space<vmem>>, vector<8x8xf32>
      tpu.vector_store %arg6[%c0_40, %c0_41], %47 {strides = array<i32>} : memref<8x8xf32, #tpu.memory_space<vmem>>, vector<8x8xf32>,
      %cst_42 = arith.constant 0.000000e+00 : f32
      %49 = vector.broadcast %cst_42 : f32 to vector<8x8xf32>
      %c0_43 = arith.constant 0 : index
      %c0_44 = arith.constant 0 : index
      %50 = vector.load %arg7[%c0_43, %c0_44] : memref<8x8xf32, #tpu.memory_space<vmem>>, vector<8x8xf32>
      tpu.vector_store %arg7[%c0_43, %c0_44], %49 {strides = array<i32>} : memref<8x8xf32, #tpu.memory_space<vmem>>, vector<8x8xf32>,
      %cst_45 = arith.constant 0.000000e+00 : f32
      %51 = vector.broadcast %cst_45 : f32 to vector<8x8xf32>
      %c0_46 = arith.constant 0 : index
      %c0_47 = arith.constant 0 : index
      %52 = vector.load %arg8[%c0_46, %c0_47] : memref<8x8xf32, #tpu.memory_space<vmem>>, vector<8x8xf32>
      tpu.vector_store %arg8[%c0_46, %c0_47], %51 {strides = array<i32>} : memref<8x8xf32, #tpu.memory_space<vmem>>, vector<8x8xf32>,
      %cst_48 = arith.constant 0.000000e+00 : f32
      %53 = vector.broadcast %cst_48 : f32 to vector<8x1xf32>
      %c0_49 = arith.constant 0 : index
      %c0_50 = arith.constant 0 : index
      %54 = vector.load %arg9[%c0_49, %c0_50] : memref<8x1xf32, #tpu.memory_space<vmem>>, vector<8x1xf32>
      tpu.vector_store %arg9[%c0_49, %c0_50], %53 {strides = array<i32>} : memref<8x1xf32, #tpu.memory_space<vmem>>, vector<8x1xf32>,
      %cst_51 = arith.constant 0.000000e+00 : f32
      %55 = vector.broadcast %cst_51 : f32 to vector<1x8xf32>
      %c0_52 = arith.constant 0 : index
      %c0_53 = arith.constant 0 : index
      %56 = vector.load %arg10[%c0_52, %c0_53] : memref<1x8xf32, #tpu.memory_space<vmem>>, vector<1x8xf32>
      tpu.vector_store %arg10[%c0_52, %c0_53], %55 {strides = array<i32>} : memref<1x8xf32, #tpu.memory_space<vmem>>, vector<1x8xf32>,
      %cst_54 = arith.constant 0.000000e+00 : f32
      %57 = vector.broadcast %cst_54 : f32 to vector<1x8xf32>
      %c0_55 = arith.constant 0 : index
      %c0_56 = arith.constant 0 : index
      %58 = vector.load %arg11[%c0_55, %c0_56] : memref<1x8xf32, #tpu.memory_space<vmem>>, vector<1x8xf32>
      tpu.vector_store %arg11[%c0_55, %c0_56], %57 {strides = array<i32>} : memref<1x8xf32, #tpu.memory_space<vmem>>, vector<1x8xf32>,
    } else {
    }
    %c0 = arith.constant 0 : index
    %c0_1 = arith.constant 0 : index
    %3 = vector.load %arg2[%c0, %c0_1] : memref<8x128xf32, #tpu.memory_space<vmem>>, vector<8x128xf32>
    %c0_2 = arith.constant 0 : index
    %c0_3 = arith.constant 0 : index
    %4 = vector.load %arg3[%c0_2, %c0_3] : memref<8x128xbf16, #tpu.memory_space<vmem>>, vector<8x128xbf16>
    %5 = arith.extf %4 : vector<8x128xbf16> to vector<8x128xf32>
    %cst = arith.constant 5.000000e-01 : f32
    %6 = vector.broadcast %cst : f32 to vector<8x128xf32>
    %7 = arith.cmpf ogt, %3, %6 : vector<8x128xf32>
    %8 = arith.extui %7 : vector<8x128xi1> to vector<8x128xi32>
    %9 = arith.sitofp %8 : vector<8x128xi32> to vector<8x128xf32>
    %10 = math.log %3 : vector<8x128xf32>
    %cst_4 = arith.constant -1.000000e+02 : f32
    %11 = vector.broadcast %cst_4 : f32 to vector<8x128xf32>
    %12 = arith.maximumf %10, %11 : vector<8x128xf32>
    %cst_5 = arith.constant 1.000000e+00 : f32
    %13 = vector.broadcast %cst_5 : f32 to vector<8x128xf32>
    %14 = arith.subf %13, %3 : vector<8x128xf32>
    %15 = math.log %14 : vector<8x128xf32>
    %cst_6 = arith.constant -1.000000e+02 : f32
    %16 = vector.broadcast %cst_6 : f32 to vector<8x128xf32>
    %17 = arith.maximumf %15, %16 : vector<8x128xf32>
    %cst_7 = arith.constant 1.000000e+00 : f32
    %18 = vector.broadcast %cst_7 : f32 to vector<1x128xf32>
    %c0_8 = arith.constant 0 : index
    %c0_9 = arith.constant 0 : index
    %19 = vector.load %arg6[%c0_8, %c0_9] : memref<8x8xf32, #tpu.memory_space<vmem>>, vector<8x8xf32>
    %cst_10 = arith.constant dense<0.000000e+00> : vector<8x8xf32>
    %20 = tpu.matmul %5, %9, %cst_10 {dimension_numbers = #tpu.dot_dimension_numbers<[1], [1], [0], [0], [0, 0, 1, 0], [], []>} : vector<8x128xf32>, vector<8x128xf32>, vector<8x8xf32> -> vector<8x8xf32>
    %21 = arith.addf %19, %20 : vector<8x8xf32>
    %c0_11 = arith.constant 0 : index
    %c0_12 = arith.constant 0 : index
    %22 = vector.load %arg6[%c0_11, %c0_12] : memref<8x8xf32, #tpu.memory_space<vmem>>, vector<8x8xf32>
    tpu.vector_store %arg6[%c0_11, %c0_12], %21 {strides = array<i32>} : memref<8x8xf32, #tpu.memory_space<vmem>>, vector<8x8xf32>,
    %c0_13 = arith.constant 0 : index
    %c0_14 = arith.constant 0 : index
    %23 = vector.load %arg10[%c0_13, %c0_14] : memref<1x8xf32, #tpu.memory_space<vmem>>, vector<1x8xf32>
    %cst_15 = arith.constant dense<0.000000e+00> : vector<1x8xf32>
    %24 = tpu.matmul %18, %9, %cst_15 {dimension_numbers = #tpu.dot_dimension_numbers<[1], [1], [0], [0], [0, 0, 1, 0], [], []>} : vector<1x128xf32>, vector<8x128xf32>, vector<1x8xf32> -> vector<1x8xf32>
    %25 = arith.addf %23, %24 : vector<1x8xf32>
    %c0_16 = arith.constant 0 : index
    %c0_17 = arith.constant 0 : index
    %26 = vector.load %arg10[%c0_16, %c0_17] : memref<1x8xf32, #tpu.memory_space<vmem>>, vector<1x8xf32>
    tpu.vector_store %arg10[%c0_16, %c0_17], %25 {strides = array<i32>} : memref<1x8xf32, #tpu.memory_space<vmem>>, vector<1x8xf32>,
    %c0_18 = arith.constant 0 : index
    %c0_19 = arith.constant 0 : index
    %27 = vector.load %arg9[%c0_18, %c0_19] : memref<8x1xf32, #tpu.memory_space<vmem>>, vector<8x1xf32>
    %cst_20 = arith.constant dense<0.000000e+00> : vector<8xf32>
    %28 = vector.multi_reduction <add>, %5, %cst_20 [1] : vector<8x128xf32> to vector<8xf32>
    %29 = vector.shape_cast %28 : vector<8xf32> to vector<8x1xf32>
    %30 = arith.addf %27, %29 : vector<8x1xf32>
    %c0_21 = arith.constant 0 : index
    %c0_22 = arith.constant 0 : index
    %31 = vector.load %arg9[%c0_21, %c0_22] : memref<8x1xf32, #tpu.memory_space<vmem>>, vector<8x1xf32>
    tpu.vector_store %arg9[%c0_21, %c0_22], %30 {strides = array<i32>} : memref<8x1xf32, #tpu.memory_space<vmem>>, vector<8x1xf32>,
    %c0_23 = arith.constant 0 : index
    %c0_24 = arith.constant 0 : index
    %32 = vector.load %arg7[%c0_23, %c0_24] : memref<8x8xf32, #tpu.memory_space<vmem>>, vector<8x8xf32>
    %cst_25 = arith.constant dense<0.000000e+00> : vector<8x8xf32>
    %33 = tpu.matmul %5, %12, %cst_25 {dimension_numbers = #tpu.dot_dimension_numbers<[1], [1], [0], [0], [0, 0, 1, 0], [], []>} : vector<8x128xf32>, vector<8x128xf32>, vector<8x8xf32> -> vector<8x8xf32>
    %34 = arith.addf %32, %33 : vector<8x8xf32>
    %c0_26 = arith.constant 0 : index
    %c0_27 = arith.constant 0 : index
    %35 = vector.load %arg7[%c0_26, %c0_27] : memref<8x8xf32, #tpu.memory_space<vmem>>, vector<8x8xf32>
    tpu.vector_store %arg7[%c0_26, %c0_27], %34 {strides = array<i32>} : memref<8x8xf32, #tpu.memory_space<vmem>>, vector<8x8xf32>,
    %c0_28 = arith.constant 0 : index
    %c0_29 = arith.constant 0 : index
    %36 = vector.load %arg8[%c0_28, %c0_29] : memref<8x8xf32, #tpu.memory_space<vmem>>, vector<8x8xf32>
    %cst_30 = arith.constant dense<0.000000e+00> : vector<8x8xf32>
    %37 = tpu.matmul %5, %17, %cst_30 {dimension_numbers = #tpu.dot_dimension_numbers<[1], [1], [0], [0], [0, 0, 1, 0], [], []>} : vector<8x128xf32>, vector<8x128xf32>, vector<8x8xf32> -> vector<8x8xf32>
    %38 = arith.addf %36, %37 : vector<8x8xf32>
    %c0_31 = arith.constant 0 : index
    %c0_32 = arith.constant 0 : index
    %39 = vector.load %arg8[%c0_31, %c0_32] : memref<8x8xf32, #tpu.memory_space<vmem>>, vector<8x8xf32>
    tpu.vector_store %arg8[%c0_31, %c0_32], %38 {strides = array<i32>} : memref<8x8xf32, #tpu.memory_space<vmem>>, vector<8x8xf32>,
    %c0_33 = arith.constant 0 : index
    %c0_34 = arith.constant 0 : index
    %40 = vector.load %arg11[%c0_33, %c0_34] : memref<1x8xf32, #tpu.memory_space<vmem>>, vector<1x8xf32>
    %cst_35 = arith.constant dense<0.000000e+00> : vector<1x8xf32>
    %41 = tpu.matmul %18, %17, %cst_35 {dimension_numbers = #tpu.dot_dimension_numbers<[1], [1], [0], [0], [0, 0, 1, 0], [], []>} : vector<1x128xf32>, vector<8x128xf32>, vector<1x8xf32> -> vector<1x8xf32>
    %42 = arith.addf %40, %41 : vector<1x8xf32>
    %c0_36 = arith.constant 0 : index
    %c0_37 = arith.constant 0 : index
    %43 = vector.load %arg11[%c0_36, %c0_37] : memref<1x8xf32, #tpu.memory_space<vmem>>, vector<1x8xf32>
    tpu.vector_store %arg11[%c0_36, %c0_37], %42 {strides = array<i32>} : memref<1x8xf32, #tpu.memory_space<vmem>>, vector<1x8xf32>,
    %c1_i32 = arith.constant 1 : i32
    %44 = arith.cmpi eq, %arg1, %c1_i32 : i32
    %45 = arith.extui %44 : i1 to i32
    %c0_i32_38 = arith.constant 0 : i32
    %46 = arith.cmpi ne, %45, %c0_i32_38 : i32
    scf.if %46 {
      %c0_39 = arith.constant 0 : index
      %c0_40 = arith.constant 0 : index
      %47 = vector.load %arg6[%c0_39, %c0_40] : memref<8x8xf32, #tpu.memory_space<vmem>>, vector<8x8xf32>
      %c0_41 = arith.constant 0 : index
      %c0_42 = arith.constant 0 : index
      %48 = vector.load %arg9[%c0_41, %c0_42] : memref<8x1xf32, #tpu.memory_space<vmem>>, vector<8x1xf32>
      %c0_43 = arith.constant 0 : index
      %c0_44 = arith.constant 0 : index
      %49 = vector.load %arg10[%c0_43, %c0_44] : memref<1x8xf32, #tpu.memory_space<vmem>>, vector<1x8xf32>
      %50 = vector.broadcast %48 : vector<8x1xf32> to vector<8x8xf32>
      %51 = vector.broadcast %49 : vector<1x8xf32> to vector<8x8xf32>
      %52 = arith.addf %50, %51 : vector<8x8xf32>
      %53 = arith.subf %52, %47 : vector<8x8xf32>
      %cst_45 = arith.constant 0.000000e+00 : f32
      %54 = vector.broadcast %cst_45 : f32 to vector<8x8xf32>
      %55 = arith.cmpf ogt, %53, %54 : vector<8x8xf32>
      %cst_46 = arith.constant 9.99999997E-7 : f32
      %56 = vector.broadcast %cst_46 : f32 to vector<8x8xf32>
      %57 = arith.maximumf %53, %56 : vector<8x8xf32>
      %58 = arith.divf %47, %57 : vector<8x8xf32>
      %cst_47 = arith.constant 0.000000e+00 : f32
      %59 = vector.broadcast %cst_47 : f32 to vector<8x8xf32>
      %60 = arith.select %55, %58, %59 : vector<8x8xi1>, vector<8x8xf32>
      %c0_48 = arith.constant 0 : index
      %c0_49 = arith.constant 0 : index
      %c0_50 = arith.constant 0 : index
      %61 = vector.load %arg4[%c0_48, %c0_49, %c0_50] : memref<1x8x8xf32, #tpu.memory_space<vmem>>, vector<1x8x8xf32>
      %62 = vector.shape_cast %61 : vector<1x8x8xf32> to vector<8x8xf32>
      %63 = vector.shape_cast %60 : vector<8x8xf32> to vector<1x8x8xf32>
      tpu.vector_store %arg4[%c0_48, %c0_49, %c0_50], %63 {strides = array<i32>} : memref<1x8x8xf32, #tpu.memory_space<vmem>>, vector<1x8x8xf32>,
      %c0_51 = arith.constant 0 : index
      %c0_52 = arith.constant 0 : index
      %64 = vector.load %arg7[%c0_51, %c0_52] : memref<8x8xf32, #tpu.memory_space<vmem>>, vector<8x8xf32>
      %c0_53 = arith.constant 0 : index
      %c0_54 = arith.constant 0 : index
      %65 = vector.load %arg8[%c0_53, %c0_54] : memref<8x8xf32, #tpu.memory_space<vmem>>, vector<8x8xf32>
      %66 = arith.subf %64, %65 : vector<8x8xf32>
      %c0_55 = arith.constant 0 : index
      %c0_56 = arith.constant 0 : index
      %67 = vector.load %arg11[%c0_55, %c0_56] : memref<1x8xf32, #tpu.memory_space<vmem>>, vector<1x8xf32>
      %68 = vector.broadcast %67 : vector<1x8xf32> to vector<8x8xf32>
      %69 = arith.addf %66, %68 : vector<8x8xf32>
      %cst_57 = arith.constant 0.000000e+00 : f32
      %70 = vector.broadcast %cst_57 : f32 to vector<8x8xf32>
      %71 = arith.subf %70, %69 : vector<8x8xf32>
      %cst_58 = arith.constant 3.906250e-03 : f32
      %72 = vector.broadcast %cst_58 : f32 to vector<8x8xf32>
      %73 = arith.mulf %71, %72 : vector<8x8xf32>
      %c0_59 = arith.constant 0 : index
      %c0_60 = arith.constant 0 : index
      %c0_61 = arith.constant 0 : index
      %74 = vector.load %arg5[%c0_59, %c0_60, %c0_61] : memref<1x8x8xf32, #tpu.memory_space<vmem>>, vector<1x8x8xf32>
      %75 = vector.shape_cast %74 : vector<1x8x8xf32> to vector<8x8xf32>
      %76 = vector.shape_cast %73 : vector<8x8xf32> to vector<1x8x8xf32>
      tpu.vector_store %arg5[%c0_59, %c0_60, %c0_61], %76 {strides = array<i32>} : memref<1x8x8xf32, #tpu.memory_space<vmem>>, vector<1x8x8xf32>,
    } else {
    }
    return
  }
  func.func @transform_0(%arg0: i32, %arg1: i32) -> (i32, i32) {
    %c0_i32 = arith.constant 0 : i32
    return %arg0, %arg1 : i32, i32
  }
  func.func @transform_1(%arg0: i32, %arg1: i32) -> (i32, i32) {
    %c0_i32 = arith.constant 0 : i32
    return %arg0, %arg1 : i32, i32
  }
  func.func @transform_2(%arg0: i32, %arg1: i32) -> (i32, i32, i32) {
    %c0_i32 = arith.constant 0 : i32
    %c0_i32_0 = arith.constant 0 : i32
    %c0_i32_1 = arith.constant 0 : i32
    return %arg0, %c0_i32, %c0_i32_0 : i32, i32, i32
  }
  func.func @transform_3(%arg0: i32, %arg1: i32) -> (i32, i32, i32) {
    %c0_i32 = arith.constant 0 : i32
    %c0_i32_0 = arith.constant 0 : i32
    %c0_i32_1 = arith.constant 0 : i32
    return %arg0, %c0_i32, %c0_i32_0 : i32, i32, i32
  }
}

</mosaic_0001>

<llo_original>
// kernel: tpu_custom_call.1
$region0: #{tpu_custom_call.1}
  #allocation0 [shape = 'u32[]', space=smem, size = 0x4, offset = 0x4, fixed_abs, tag = 'smem constant byte address 0x4 - core index']
  #allocation1 [shape = 'u32[144,128]{1,0:T(1,128)}', space=vmem, size = 0x12000, scoped, tag = 'internal scratch']
  #allocation2 [shape = 'f32[8,8]{1,0:T(8,128)}', space=vmem, size = 0x1000, scoped, tag = 'scratch operand']
  #allocation3 [shape = 'f32[8,8]{1,0:T(8,128)}', space=vmem, size = 0x1000, scoped, tag = 'scratch operand']
  #allocation4 [shape = 'f32[8,8]{1,0:T(8,128)}', space=vmem, size = 0x1000, scoped, tag = 'scratch operand']
  #allocation5 [shape = 'f32[8,1]{1,0:T(8,128)}', space=vmem, size = 0x1000, scoped, tag = 'scratch operand']
  #allocation6 [shape = 'f32[1,8]{1,0:T(1,128)}', space=vmem, size = 0x200, scoped, tag = 'scratch operand']
  #allocation7 [shape = 'f32[1,8]{1,0:T(1,128)}', space=vmem, size = 0x200, scoped, tag = 'scratch operand']
  %s0 = inlined_call_operand.hbm [shape: f32[8,256], index: 0, kind: input, shape index: {}]
  %s1 = inlined_call_operand.hbm [shape: bf16[8,256], index: 1, kind: input, shape index: {}]
  %s2 = inlined_call_operand.hbm [shape: f32[1,8,8], index: 2, kind: output, shape index: {0}]
  %s3 = inlined_call_operand.hbm [shape: f32[1,8,8], index: 3, kind: output, shape index: {1}]
  %4 = xla_tuple %s2, %s3
  %s5 = sld [smem:[#allocation0]]
  $region65: #{tpu_custom_call.1} parent=0
    _
  %s7 = ssub.s32 1, %s5
  %s8 = scalar_select 0, %s7, %s5
  $region1: #{tpu_custom_call.1} parent=0
    #allocation8 [shape = 'u8[8192]{0}', space=vmem, size = 0x2000, scoped, tag = 'input window, operand 0']
    #allocation9 [shape = 's32[2]{0}', space=sflag, size = 0x8, scoped, tag = 'scoped memory for tpu_custom_call.1']
    #allocation10 [shape = 's32[2]{0}', space=sflag, size = 0x8, scoped, tag = 'scoped memory for tpu_custom_call.1']
    #allocation11 [shape = 'u8[4096]{0}', space=vmem, size = 0x1000, scoped, tag = 'input window, operand 1']
    #allocation12 [shape = 's32[2]{0}', space=sflag, size = 0x8, scoped, tag = 'scoped memory for tpu_custom_call.1']
    #allocation13 [shape = 'u8[4096]{0}', space=vmem, size = 0x1000, scoped, tag = 'output window, operand 0, single buffered']
    #allocation14 [shape = 'u8[4096]{0}', space=vmem, size = 0x1000, scoped, tag = 'output window, operand 1, single buffered']
    #allocation15 [shape = 's32[1]{0}', space=sflag, size = 0x4, scoped, tag = 'scoped memory for tpu_custom_call.1']
    %9 = vsyncpa [#allocation9], 0
    %s10 = scalar_lea.sflag [#allocation9], 1
    %11 = vsyncpa %s10, 0
    %12 = vsyncpa [#allocation12], 0
    %s13 = scalar_lea.sflag [#allocation12], 1
    %14 = vsyncpa %s13, 0
    %15 = vsyncpa [#allocation10], 0
    %16 = vsyncpa [#allocation15], 0
    loop: start=0, step=1, limit=4
    $region2: #{tpu_custom_call.1} parent=1 // loop_pre_header
      _
    $region3: #{tpu_custom_call.1} parent=1 // loop_header
      %s18 = sphi 0, %s22
      %p19 = scmp.ge.s32.totalorder %s18, 4
      %s25 = sphi 0, %s37
      %s26 = sphi 0, %s33
      %s27 = sphi 0, %s25
      %s28 = sphi 0, %s26
      %s29 = sphi 0, %s27
      %s30 = sphi 0, %s28
      %s42 = sphi 0, %s44
      %s45 = sphi 0, %s42
      %s46 = sphi 0, %s45
      %s62 = sphi 0, %s46
      %s70 = sphi 0, %s72
      %s73 = sphi 0, %s70
      %s74 = sphi 0, %s73
      %s90 = sphi 0, %s74
      %s96 = sphi 0, %s98
      %s99 = sphi 0, %s96
      %s100 = sphi 0, %s99
      %s116 = sphi 0, %s100
      %s122 = sphi 0, %s124
      %s125 = sphi 0, %s122
      %s126 = sphi 0, %s125
      %s142 = sphi 0, %s126
    $region4: #{tpu_custom_call.1} parent=1 // loop_header_branch
      %21 = sbr.rel (%p19) target = $region8
    $region5: #{tpu_custom_call.1} parent=1 // loop_body
      %s23 = ssub.s32 %s18, 1
      %s24 = ssub.s32 %s18, 2
      %s31 = sadd.s32 1, %s26
      %p32 = scmp.ge.s32.totalorder %s31, 2
      %s33 = scalar_select %p32, 0, %s31
      %s34 = sadd.s32 1, %s25
      %s35 = scalar_select %p32, %s34, %s25
      %p36 = scmp.ge.s32.totalorder %s35, 1
      %s37 = scalar_select %p36, 0, %s35
      %s38 = ssub.s32 %s25, %s37
      %s39 = ssub.s32 %s26, %s33
      %s40 = sor.u32 %s38, %s39
      %p41 = scmp.eq.s32.totalorder %s40, 0
      %s43 = sadd.s32 %s42, 1
      %s44 = scalar_select %p41, %s42, %s43
      %p47 = pneg %p41
      %p48 = scmp.eq.s32.totalorder %s18, 1
      %p49 = por %p47, %p48
      %p50 = scmp.ne.s32.totalorder %s42, %s45
      %p51 = scmp.eq.s32.totalorder %s18, 0
      %p52 = por %p50, %p51
      %p53 = scmp.ne.s32.totalorder %s42, %s45
      %p54 = scmp.eq.s32.totalorder %s23, 1
      %p55 = por %p53, %p54
      %p56 = scmp.ne.s32.totalorder %s45, %s46
      %p57 = scmp.eq.s32.totalorder %s23, 0
      %p58 = por %p56, %p57
      %p59 = scmp.ne.s32.totalorder %s45, %s46
      %p60 = scmp.eq.s32.totalorder %s24, 1
      %p61 = por %p59, %p60
      %p63 = scmp.ne.s32.totalorder %s46, %s62
      %p64 = scmp.eq.s32.totalorder %s24, 0
      %p65 = por %p63, %p64
      %s66 = ssub.s32 %s25, %s37
      %s67 = ssub.s32 %s26, %s33
      %s68 = sor.u32 %s66, %s67
      %p69 = scmp.eq.s32.totalorder %s68, 0
      %s71 = sadd.s32 %s70, 1
      %s72 = scalar_select %p69, %s70, %s71
      %p75 = pneg %p69
      %p76 = scmp.eq.s32.totalorder %s18, 1
      %p77 = por %p75, %p76
      %p78 = scmp.ne.s32.totalorder %s70, %s73
      %p79 = scmp.eq.s32.totalorder %s18, 0
      %p80 = por %p78, %p79
      %p81 = scmp.ne.s32.totalorder %s70, %s73
      %p82 = scmp.eq.s32.totalorder %s23, 1
      %p83 = por %p81, %p82
      %p84 = scmp.ne.s32.totalorder %s73, %s74
      %p85 = scmp.eq.s32.totalorder %s23, 0
      %p86 = por %p84, %p85
      %p87 = scmp.ne.s32.totalorder %s73, %s74
      %p88 = scmp.eq.s32.totalorder %s24, 1
      %p89 = por %p87, %p88
      %p91 = scmp.ne.s32.totalorder %s74, %s90
      %p92 = scmp.eq.s32.totalorder %s24, 0
      %p93 = por %p91, %p92
      %s94 = ssub.s32 %s25, %s37
      %p95 = scmp.eq.s32.totalorder %s94, 0
      %s97 = sadd.s32 %s96, 1
      %s98 = scalar_select %p95, %s96, %s97
      %p101 = pneg %p95
      %p102 = scmp.eq.s32.totalorder %s18, 1
      %p103 = por %p101, %p102
      %p104 = scmp.ne.s32.totalorder %s96, %s99
      %p105 = scmp.eq.s32.totalorder %s18, 0
      %p106 = por %p104, %p105
      %p107 = scmp.ne.s32.totalorder %s96, %s99
      %p108 = scmp.eq.s32.totalorder %s23, 1
      %p109 = por %p107, %p108
      %p110 = scmp.ne.s32.totalorder %s99, %s100
      %p111 = scmp.eq.s32.totalorder %s23, 0
      %p112 = por %p110, %p111
      %p113 = scmp.ne.s32.totalorder %s99, %s100
      %p114 = scmp.eq.s32.totalorder %s24, 1
      %p115 = por %p113, %p114
      %p117 = scmp.ne.s32.totalorder %s100, %s116
      %p118 = scmp.eq.s32.totalorder %s24, 0
      %p119 = por %p117, %p118
      %s120 = ssub.s32 %s25, %s37
      %p121 = scmp.eq.s32.totalorder %s120, 0
      %s123 = sadd.s32 %s122, 1
      %s124 = scalar_select %p121, %s122, %s123
      %p127 = pneg %p121
      %p128 = scmp.eq.s32.totalorder %s18, 1
      %p129 = por %p127, %p128
      %p130 = scmp.ne.s32.totalorder %s122, %s125
      %p131 = scmp.eq.s32.totalorder %s18, 0
      %p132 = por %p130, %p131
      %p133 = scmp.ne.s32.totalorder %s122, %s125
      %p134 = scmp.eq.s32.totalorder %s23, 1
      %p135 = por %p133, %p134
      %p136 = scmp.ne.s32.totalorder %s125, %s126
      %p137 = scmp.eq.s32.totalorder %s23, 0
      %p138 = por %p136, %p137
      %p139 = scmp.ne.s32.totalorder %s125, %s126
      %p140 = scmp.eq.s32.totalorder %s24, 1
      %p141 = por %p139, %p140
      %p143 = scmp.ne.s32.totalorder %s126, %s142
      %p144 = scmp.eq.s32.totalorder %s24, 0
      %p145 = por %p143, %p144
      %p146 = scmp.le.s32.totalorder 1, %s18
      %p147 = scmp.lt.s32.totalorder %s18, 3
      %p148 = pnand %p146, %p147
      %p149 = pneg %p148
      // Predicated region
      $region9: #{tpu_custom_call.1} parent=5 // pred_check
        _
      $region10: #{tpu_custom_call.1} parent=5 // pred_check_branch
        %151 = sbr.rel (%p148) target = $region12
      $region11: #{tpu_custom_call.1} parent=5 // pred_region
        %s152 = ssub.s32 %s18, 1
      $region12: #{tpu_custom_call.1} parent=5 // pred_fallthru
        _
      %p153 = scmp.lt.s32.totalorder %s18, 2
      // Predicated region
      $region13: #{tpu_custom_call.1} parent=5 // pred_check
        %p154 = pneg %p153
      $region14: #{tpu_custom_call.1} parent=5 // pred_check_branch
        %156 = sbr.rel (%p154) target = $region16
      $region15: #{tpu_custom_call.1} parent=5 // pred_region
        // Predicated region
        $region17: #{tpu_custom_call.1} parent=15 // pred_check
          %p157 = pneg %p52
        $region18: #{tpu_custom_call.1} parent=15 // pred_check_branch
          %159 = sbr.rel (%p157) target = $region20
        $region19: #{tpu_custom_call.1} parent=15 // pred_region
          %s160 = sand.u32 %s42, 1
          %s161 = scalar_lea.sflag [#allocation9], %s160
          %s162 = sand.u32 %s42, 1
          %s163 = smul.addr %s162, 8
          %s164 = scalar_lea.vmem [#allocation8], %s163
          %s166 = ssub.s32 128, 128
          %167 = vsyncadd %s161, %s166
          %s168 = smul.addr %s25, 2
          %s169 = sadd.s32 %s26, %s168
          %s170 = smul.addr %s169, 128
          %s171 = scalar_lea.hbm %s0, %s170
          %s173 = sshll.u32 %s164, 4
          %s174 = int_to_ptr.vmem [resolvable:$true] %s173
          %176 = dma.hbm_to_vmem [thread:$0]  %s171, 128, %s174, %s161
        $region20: #{tpu_custom_call.1} parent=15 // pred_fallthru
          _
        // Predicated region
        $region21: #{tpu_custom_call.1} parent=15 // pred_check
          %p177 = pneg %p80
        $region22: #{tpu_custom_call.1} parent=15 // pred_check_branch
          %179 = sbr.rel (%p177) target = $region24
        $region23: #{tpu_custom_call.1} parent=15 // pred_region
          %s180 = sand.u32 %s70, 1
          %s181 = scalar_lea.sflag [#allocation12], %s180
          %s182 = sand.u32 %s70, 1
          %s183 = smul.addr %s182, 4
          %s184 = scalar_lea.vmem [#allocation11], %s183
          %s186 = ssub.s32 64, 64
          %187 = vsyncadd %s181, %s186
          %s188 = smul.addr %s25, 2
          %s189 = sadd.s32 %s26, %s188
          %s190 = smul.addr %s189, 64
          %s191 = scalar_lea.hbm %s1, %s190
          %s193 = sshll.u32 %s184, 4
          %s194 = int_to_ptr.vmem [resolvable:$true] %s193
          %196 = dma.hbm_to_vmem [thread:$0]  %s191, 64, %s194, %s181
        $region24: #{tpu_custom_call.1} parent=15 // pred_fallthru
          _
      $region16: #{tpu_custom_call.1} parent=5 // pred_fallthru
        _
      %p197 = scmp.le.s32.totalorder 1, %s18
      %p198 = scmp.lt.s32.totalorder %s18, 3
      %p199 = pnand %p197, %p198
      %p200 = pneg %p199
      // Predicated region
      $region25: #{tpu_custom_call.1} parent=5 // pred_check
        _
      $region26: #{tpu_custom_call.1} parent=5 // pred_check_branch
        %202 = sbr.rel (%p199) target = $region28
      $region27: #{tpu_custom_call.1} parent=5 // pred_region
        %s203 = ssub.s32 %s18, 1
        %s204 = sand.u32 %s45, 1
        %s205 = scalar_lea.sflag [#allocation9], %s204
        %s206 = sand.u32 %s45, 1
        %s207 = smul.addr %s206, 8
        %s208 = scalar_lea.vmem [#allocation8], %s207
        // Predicated region
        $region29: #{tpu_custom_call.1} parent=27 // pred_check
          %p209 = pneg %p58
        $region30: #{tpu_custom_call.1} parent=27 // pred_check_branch
          %211 = sbr.rel (%p209) target = $region32
        $region31: #{tpu_custom_call.1} parent=27 // pred_region
          %212 = dma.done %s205, 128
        $region32: #{tpu_custom_call.1} parent=27 // pred_fallthru
          _
        %s213 = sand.u32 %s73, 1
        %s214 = scalar_lea.sflag [#allocation12], %s213
        %s215 = sand.u32 %s73, 1
        %s216 = smul.addr %s215, 4
        %s217 = scalar_lea.vmem [#allocation11], %s216
        // Predicated region
        $region33: #{tpu_custom_call.1} parent=27 // pred_check
          %p218 = pneg %p86
        $region34: #{tpu_custom_call.1} parent=27 // pred_check_branch
          %220 = sbr.rel (%p218) target = $region36
        $region35: #{tpu_custom_call.1} parent=27 // pred_region
          %221 = dma.done %s214, 64
        $region36: #{tpu_custom_call.1} parent=27 // pred_fallthru
          _
        %s222 = sand.u32 %s45, 1
        %s223 = scalar_lea.sflag [#allocation9], %s222
        %s224 = sand.u32 %s45, 1
        %s225 = smul.addr %s224, 8
        %s226 = scalar_lea.vmem [#allocation8], %s225
        %p227 = pneg %p58
        %p228 = pneg %p55
        %s229 = sand.u32 %s73, 1
        %s230 = scalar_lea.sflag [#allocation12], %s229
        %s231 = sand.u32 %s73, 1
        %s232 = smul.addr %s231, 4
        %s233 = scalar_lea.vmem [#allocation11], %s232
        %p234 = pneg %p86
        %p235 = pneg %p83
        %p236 = pneg %p112
        %p237 = pneg %p109
        %p238 = pneg %p138
        %p239 = pneg %p135
        %p240 = scmp.eq.s32.totalorder %s28, 0
        // Predicated region
        $region37: #{tpu_custom_call.1} parent=27 // pred_check
          %p241 = pneg %p240
        $region38: #{tpu_custom_call.1} parent=27 // pred_check_branch
          %243 = sbr.rel (%p241) target = $region40
        $region39: #{tpu_custom_call.1} parent=27 // pred_region
          %vm244 = vcmask 64512
          %245 = vst.msk [vmem:[#allocation2] sm:$0xff] %vm244, 0.0
          %246 = vst.msk [vmem:[#allocation3] sm:$0xff] %vm244, 0.0
          %247 = vst.msk [vmem:[#allocation4] sm:$0xff] %vm244, 0.0
          %vm248 = vcmask 7168
          %249 = vst.msk [vmem:[#allocation5] sm:$0xff] %vm248, 0.0
          %vm250 = vcmask 57344
          %251 = vst.msk [vmem:[#allocation6] sm:$0x1] %vm250, 0.0
          %252 = vst.msk [vmem:[#allocation7] sm:$0x1] %vm250, 0.0
        $region40: #{tpu_custom_call.1} parent=27 // pred_fallthru
          _
        %v253 = vld [vmem:[%s208] sm:$0xff]
        %v254 = vld [vmem:[%s217] sm:$0xf]
        %v255 = vunpack.c.l.bf16 %v254
        %vm256 = vcmp.gt.f32.partialorder %v253, 0.5
        %v257 = vsel %vm256, 1, 0
        %v258 = vcvt.s32.f32 %v257
        %v259 = vlog2.pop %v253
        %v260 = vmul.f32 %v259, 0.6931472
        %v261 = vmax.f32 %v260, -100.0
        %v262 = vsub.f32 1.0, %v253
        %v263 = vlog2.pop %v262
        %v264 = vmul.f32 %v263, 0.6931472
        %v265 = vmax.f32 %v264, -100.0
        %v266 = vld [vmem:[#allocation2] sm:$0xff]
        %267 = vmatprep.subr.mxu0 0.0
        %268 = vmatpush1.xpose.msra.mxu0 %v258
        %269 = vmatprep.subr.mxu0 0.0
        %270 = vmatpush1.xpose.msra.mxu0 0.0
        %271 = vmatprep.subr.mxu0 0.0
        %272 = vmatpush1.xpose.msra.mxu0 0.0
        %273 = vmatprep.subr.mxu0 0.0
        %274 = vmatpush1.xpose.msra.mxu0 0.0
        %275 = vmatprep.subr.mxu0 0.0
        %276 = vmatpush1.xpose.msra.mxu0 0.0
        %277 = vmatprep.subr.mxu0 0.0
        %278 = vmatpush1.xpose.msra.mxu0 0.0
        %279 = vmatprep.subr.mxu0 0.0
        %280 = vmatpush1.xpose.msra.mxu0 0.0
        %281 = vmatprep.subr.mxu0 0.0
        %282 = vmatpush1.xpose.msra.mxu0 0.0
        %283 = vmatprep.subr.mxu0 0.0
        %284 = vmatpush1.xpose.msra.mxu0 0.0
        %285 = vmatprep.subr.mxu0 0.0
        %286 = vmatpush1.xpose.msra.mxu0 0.0
        %287 = vmatprep.subr.mxu0 0.0
        %288 = vmatpush1.xpose.msra.mxu0 0.0
        %289 = vmatprep.subr.mxu0 0.0
        %290 = vmatpush1.xpose.msra.mxu0 0.0
        %291 = vmatprep.subr.mxu0 0.0
        %292 = vmatpush1.xpose.msra.mxu0 0.0
        %293 = vmatprep.subr.mxu0 0.0
        %294 = vmatpush1.xpose.msra.mxu0 0.0
        %295 = vmatprep.subr.mxu0 0.0
        %296 = vmatpush1.xpose.msra.mxu0 0.0
        %297 = vmatprep.subr.mxu0 0.0
        %298 = vmatpush1.xpose.msra.mxu0 0.0
        %299 = vmatprep.subr.mxu0 0.0
        %300 = vmatpush1.xpose.msra.mxu0 0.0
        %301 = vmatprep.subr.mxu0 0.0
        %302 = vmatpush1.xpose.msra.mxu0 0.0
        %303 = vmatprep.subr.mxu0 0.0
        %304 = vmatpush1.xpose.msra.mxu0 0.0
        %305 = vmatprep.subr.mxu0 0.0
        %306 = vmatpush1.xpose.msra.mxu0 0.0
        %307 = vmatprep.subr.mxu0 0.0
        %308 = vmatpush1.xpose.msra.mxu0 0.0
        %309 = vmatprep.subr.mxu0 0.0
        %310 = vmatpush1.xpose.msra.mxu0 0.0
        %311 = vmatprep.subr.mxu0 0.0
        %312 = vmatpush1.xpose.msra.mxu0 0.0
        %313 = vmatprep.subr.mxu0 0.0
        %314 = vmatpush1.xpose.msra.mxu0 0.0
        %315 = vmatprep.subr.mxu0 0.0
        %316 = vmatpush1.xpose.msra.mxu0 0.0
        %317 = vmatprep.subr.mxu0 0.0
        %318 = vmatpush1.xpose.msra.mxu0 0.0
        %319 = vmatprep.subr.mxu0 0.0
        %320 = vmatpush1.xpose.msra.mxu0 0.0
        %321 = vmatprep.subr.mxu0 0.0
        %322 = vmatpush1.xpose.msra.mxu0 0.0
        %323 = vmatprep.subr.mxu0 0.0
        %324 = vmatpush1.xpose.msra.mxu0 0.0
        %325 = vmatprep.subr.mxu0 0.0
        %326 = vmatpush1.xpose.msra.mxu0 0.0
        %327 = vmatprep.subr.mxu0 0.0
        %328 = vmatpush1.xpose.msra.mxu0 0.0
        %329 = vmatprep.subr.mxu0 0.0
        %330 = vmatpush1.xpose.msra.mxu0 0.0
        %331 = vmatprep.mubr.f32.mxu0 0.0
        %332 = vmatmul.mubr.f32.gmra.mrb[0].mxu0 %v255
        %v333 = vpop.f32.mrb[0].mxu0
        %v334 = vadd.f32 0.0, %v333
        %v335 = vpop.f32.mrb[0].mxu0
        %336 = vdwg.mxu0
        %v337 = vadd.f32 %v266, %v334
        %vm338 = vcmask 64512
        %339 = vst.msk [vmem:[#allocation2] sm:$0xff] %vm338, %v337
        %v340 = vld [vmem:[#allocation6] sm:$0x1]
        %341 = vmatprep.subr.mxu0 0.0
        %342 = vmatpush1.xpose.msra.mxu0 %v258
        %343 = vmatprep.subr.mxu0 0.0
        %344 = vmatpush1.xpose.msra.mxu0 0.0
        %345 = vmatprep.subr.mxu0 0.0
        %346 = vmatpush1.xpose.msra.mxu0 0.0
        %347 = vmatprep.subr.mxu0 0.0
        %348 = vmatpush1.xpose.msra.mxu0 0.0
        %349 = vmatprep.subr.mxu0 0.0
        %350 = vmatpush1.xpose.msra.mxu0 0.0
        %351 = vmatprep.subr.mxu0 0.0
        %352 = vmatpush1.xpose.msra.mxu0 0.0
        %353 = vmatprep.subr.mxu0 0.0
        %354 = vmatpush1.xpose.msra.mxu0 0.0
        %355 = vmatprep.subr.mxu0 0.0
        %356 = vmatpush1.xpose.msra.mxu0 0.0
        %357 = vmatprep.subr.mxu0 0.0
        %358 = vmatpush1.xpose.msra.mxu0 0.0
        %359 = vmatprep.subr.mxu0 0.0
        %360 = vmatpush1.xpose.msra.mxu0 0.0
        %361 = vmatprep.subr.mxu0 0.0
        %362 = vmatpush1.xpose.msra.mxu0 0.0
        %363 = vmatprep.subr.mxu0 0.0
        %364 = vmatpush1.xpose.msra.mxu0 0.0
        %365 = vmatprep.subr.mxu0 0.0
        %366 = vmatpush1.xpose.msra.mxu0 0.0
        %367 = vmatprep.subr.mxu0 0.0
        %368 = vmatpush1.xpose.msra.mxu0 0.0
        %369 = vmatprep.subr.mxu0 0.0
        %370 = vmatpush1.xpose.msra.mxu0 0.0
        %371 = vmatprep.subr.mxu0 0.0
        %372 = vmatpush1.xpose.msra.mxu0 0.0
        %373 = vmatprep.subr.mxu0 0.0
        %374 = vmatpush1.xpose.msra.mxu0 0.0
        %375 = vmatprep.subr.mxu0 0.0
        %376 = vmatpush1.xpose.msra.mxu0 0.0
        %377 = vmatprep.subr.mxu0 0.0
        %378 = vmatpush1.xpose.msra.mxu0 0.0
        %379 = vmatprep.subr.mxu0 0.0
        %380 = vmatpush1.xpose.msra.mxu0 0.0
        %381 = vmatprep.subr.mxu0 0.0
        %382 = vmatpush1.xpose.msra.mxu0 0.0
        %383 = vmatprep.subr.mxu0 0.0
        %384 = vmatpush1.xpose.msra.mxu0 0.0
        %385 = vmatprep.subr.mxu0 0.0
        %386 = vmatpush1.xpose.msra.mxu0 0.0
        %387 = vmatprep.subr.mxu0 0.0
        %388 = vmatpush1.xpose.msra.mxu0 0.0
        %389 = vmatprep.subr.mxu0 0.0
        %390 = vmatpush1.xpose.msra.mxu0 0.0
        %391 = vmatprep.subr.mxu0 0.0
        %392 = vmatpush1.xpose.msra.mxu0 0.0
        %393 = vmatprep.subr.mxu0 0.0
        %394 = vmatpush1.xpose.msra.mxu0 0.0
        %395 = vmatprep.subr.mxu0 0.0
        %396 = vmatpush1.xpose.msra.mxu0 0.0
        %397 = vmatprep.subr.mxu0 0.0
        %398 = vmatpush1.xpose.msra.mxu0 0.0
        %399 = vmatprep.subr.mxu0 0.0
        %400 = vmatpush1.xpose.msra.mxu0 0.0
        %401 = vmatprep.subr.mxu0 0.0
        %402 = vmatpush1.xpose.msra.mxu0 0.0
        %403 = vmatprep.subr.mxu0 0.0
        %404 = vmatpush1.xpose.msra.mxu0 0.0
        %405 = vmatprep.mubr.f32.mxu0 0.0
        %406 = vmatmul.mubr.f32.gmra.mrb[0].mxu0 1.0
        %v407 = vpop.f32.mrb[0].mxu0
        %v408 = vadd.f32 0.0, %v407
        %v409 = vpop.f32.mrb[0].mxu0
        %410 = vdwg.mxu0
        %v411 = vadd.f32 %v340, %v408
        %vm412 = vcmask 57344
        %413 = vst.msk [vmem:[#allocation6] sm:$0x1] %vm412, %v411
        %v414 = vld [vmem:[#allocation5] sm:$0xff]
        %415 = vadd.xlane.f32.xlu0 %v255
        %v416 = vpop.xlane.xlu0 %415
        %v417 = vadd.f32 %v414, %v416
        %vm418 = vcmask 7168
        %419 = vst.msk [vmem:[#allocation5] sm:$0xff] %vm418, %v417
        %v420 = vld [vmem:[#allocation3] sm:$0xff]
        %421 = vmatprep.subr.mxu0 0.0
        %422 = vmatpush1.xpose.msra.mxu0 %v261
        %423 = vmatprep.subr.mxu0 0.0
        %424 = vmatpush1.xpose.msra.mxu0 0.0
        %425 = vmatprep.subr.mxu0 0.0
        %426 = vmatpush1.xpose.msra.mxu0 0.0
        %427 = vmatprep.subr.mxu0 0.0
        %428 = vmatpush1.xpose.msra.mxu0 0.0
        %429 = vmatprep.subr.mxu0 0.0
        %430 = vmatpush1.xpose.msra.mxu0 0.0
        %431 = vmatprep.subr.mxu0 0.0
        %432 = vmatpush1.xpose.msra.mxu0 0.0
        %433 = vmatprep.subr.mxu0 0.0
        %434 = vmatpush1.xpose.msra.mxu0 0.0
        %435 = vmatprep.subr.mxu0 0.0
        %436 = vmatpush1.xpose.msra.mxu0 0.0
        %437 = vmatprep.subr.mxu0 0.0
        %438 = vmatpush1.xpose.msra.mxu0 0.0
        %439 = vmatprep.subr.mxu0 0.0
        %440 = vmatpush1.xpose.msra.mxu0 0.0
        %441 = vmatprep.subr.mxu0 0.0
        %442 = vmatpush1.xpose.msra.mxu0 0.0
        %443 = vmatprep.subr.mxu0 0.0
        %444 = vmatpush1.xpose.msra.mxu0 0.0
        %445 = vmatprep.subr.mxu0 0.0
        %446 = vmatpush1.xpose.msra.mxu0 0.0
        %447 = vmatprep.subr.mxu0 0.0
        %448 = vmatpush1.xpose.msra.mxu0 0.0
        %449 = vmatprep.subr.mxu0 0.0
        %450 = vmatpush1.xpose.msra.mxu0 0.0
        %451 = vmatprep.subr.mxu0 0.0
        %452 = vmatpush1.xpose.msra.mxu0 0.0
        %453 = vmatprep.subr.mxu0 0.0
        %454 = vmatpush1.xpose.msra.mxu0 0.0
        %455 = vmatprep.subr.mxu0 0.0
        %456 = vmatpush1.xpose.msra.mxu0 0.0
        %457 = vmatprep.subr.mxu0 0.0
        %458 = vmatpush1.xpose.msra.mxu0 0.0
        %459 = vmatprep.subr.mxu0 0.0
        %460 = vmatpush1.xpose.msra.mxu0 0.0
        %461 = vmatprep.subr.mxu0 0.0
        %462 = vmatpush1.xpose.msra.mxu0 0.0
        %463 = vmatprep.subr.mxu0 0.0
        %464 = vmatpush1.xpose.msra.mxu0 0.0
        %465 = vmatprep.subr.mxu0 0.0
        %466 = vmatpush1.xpose.msra.mxu0 0.0
        %467 = vmatprep.subr.mxu0 0.0
        %468 = vmatpush1.xpose.msra.mxu0 0.0
        %469 = vmatprep.subr.mxu0 0.0
        %470 = vmatpush1.xpose.msra.mxu0 0.0
        %471 = vmatprep.subr.mxu0 0.0
        %472 = vmatpush1.xpose.msra.mxu0 0.0
        %473 = vmatprep.subr.mxu0 0.0
        %474 = vmatpush1.xpose.msra.mxu0 0.0
        %475 = vmatprep.subr.mxu0 0.0
        %476 = vmatpush1.xpose.msra.mxu0 0.0
        %477 = vmatprep.subr.mxu0 0.0
        %478 = vmatpush1.xpose.msra.mxu0 0.0
        %479 = vmatprep.subr.mxu0 0.0
        %480 = vmatpush1.xpose.msra.mxu0 0.0
        %481 = vmatprep.subr.mxu0 0.0
        %482 = vmatpush1.xpose.msra.mxu0 0.0
        %483 = vmatprep.subr.mxu0 0.0
        %484 = vmatpush1.xpose.msra.mxu0 0.0
        %485 = vmatprep.mubr.f32.mxu0 0.0
        %486 = vmatmul.mubr.f32.gmra.mrb[0].mxu0 %v255
        %v487 = vpop.f32.mrb[0].mxu0
        %v488 = vadd.f32 0.0, %v487
        %v489 = vpop.f32.mrb[0].mxu0
        %490 = vdwg.mxu0
        %v491 = vadd.f32 %v420, %v488
        %492 = vst.msk [vmem:[#allocation3] sm:$0xff] %vm338, %v491
        %v493 = vld [vmem:[#allocation4] sm:$0xff]
        %494 = vmatprep.subr.mxu0 0.0
        %495 = vmatpush1.xpose.msra.mxu0 %v265
        %496 = vmatprep.subr.mxu0 0.0
        %497 = vmatpush1.xpose.msra.mxu0 0.0
        %498 = vmatprep.subr.mxu0 0.0
        %499 = vmatpush1.xpose.msra.mxu0 0.0
        %500 = vmatprep.subr.mxu0 0.0
        %501 = vmatpush1.xpose.msra.mxu0 0.0
        %502 = vmatprep.subr.mxu0 0.0
        %503 = vmatpush1.xpose.msra.mxu0 0.0
        %504 = vmatprep.subr.mxu0 0.0
        %505 = vmatpush1.xpose.msra.mxu0 0.0
        %506 = vmatprep.subr.mxu0 0.0
        %507 = vmatpush1.xpose.msra.mxu0 0.0
        %508 = vmatprep.subr.mxu0 0.0
        %509 = vmatpush1.xpose.msra.mxu0 0.0
        %510 = vmatprep.subr.mxu0 0.0
        %511 = vmatpush1.xpose.msra.mxu0 0.0
        %512 = vmatprep.subr.mxu0 0.0
        %513 = vmatpush1.xpose.msra.mxu0 0.0
        %514 = vmatprep.subr.mxu0 0.0
        %515 = vmatpush1.xpose.msra.mxu0 0.0
        %516 = vmatprep.subr.mxu0 0.0
        %517 = vmatpush1.xpose.msra.mxu0 0.0
        %518 = vmatprep.subr.mxu0 0.0
        %519 = vmatpush1.xpose.msra.mxu0 0.0
        %520 = vmatprep.subr.mxu0 0.0
        %521 = vmatpush1.xpose.msra.mxu0 0.0
        %522 = vmatprep.subr.mxu0 0.0
        %523 = vmatpush1.xpose.msra.mxu0 0.0
        %524 = vmatprep.subr.mxu0 0.0
        %525 = vmatpush1.xpose.msra.mxu0 0.0
        %526 = vmatprep.subr.mxu0 0.0
        %527 = vmatpush1.xpose.msra.mxu0 0.0
        %528 = vmatprep.subr.mxu0 0.0
        %529 = vmatpush1.xpose.msra.mxu0 0.0
        %530 = vmatprep.subr.mxu0 0.0
        %531 = vmatpush1.xpose.msra.mxu0 0.0
        %532 = vmatprep.subr.mxu0 0.0
        %533 = vmatpush1.xpose.msra.mxu0 0.0
        %534 = vmatprep.subr.mxu0 0.0
        %535 = vmatpush1.xpose.msra.mxu0 0.0
        %536 = vmatprep.subr.mxu0 0.0
        %537 = vmatpush1.xpose.msra.mxu0 0.0
        %538 = vmatprep.subr.mxu0 0.0
        %539 = vmatpush1.xpose.msra.mxu0 0.0
        %540 = vmatprep.subr.mxu0 0.0
        %541 = vmatpush1.xpose.msra.mxu0 0.0
        %542 = vmatprep.subr.mxu0 0.0
        %543 = vmatpush1.xpose.msra.mxu0 0.0
        %544 = vmatprep.subr.mxu0 0.0
        %545 = vmatpush1.xpose.msra.mxu0 0.0
        %546 = vmatprep.subr.mxu0 0.0
        %547 = vmatpush1.xpose.msra.mxu0 0.0
        %548 = vmatprep.subr.mxu0 0.0
        %549 = vmatpush1.xpose.msra.mxu0 0.0
        %550 = vmatprep.subr.mxu0 0.0
        %551 = vmatpush1.xpose.msra.mxu0 0.0
        %552 = vmatprep.subr.mxu0 0.0
        %553 = vmatpush1.xpose.msra.mxu0 0.0
        %554 = vmatprep.subr.mxu0 0.0
        %555 = vmatpush1.xpose.msra.mxu0 0.0
        %556 = vmatprep.subr.mxu0 0.0
        %557 = vmatpush1.xpose.msra.mxu0 0.0
        %558 = vmatprep.mubr.f32.mxu0 0.0
        %559 = vmatmul.mubr.f32.gmra.mrb[0].mxu0 %v255
        %v560 = vpop.f32.mrb[0].mxu0
        %v561 = vadd.f32 0.0, %v560
        %v562 = vpop.f32.mrb[0].mxu0
        %563 = vdwg.mxu0
        %v564 = vadd.f32 %v493, %v561
        %565 = vst.msk [vmem:[#allocation4] sm:$0xff] %vm338, %v564
        %v566 = vld [vmem:[#allocation7] sm:$0x1]
        %567 = vmatprep.subr.mxu0 0.0
        %568 = vmatpush1.xpose.msra.mxu0 %v265
        %569 = vmatprep.subr.mxu0 0.0
        %570 = vmatpush1.xpose.msra.mxu0 0.0
        %571 = vmatprep.subr.mxu0 0.0
        %572 = vmatpush1.xpose.msra.mxu0 0.0
        %573 = vmatprep.subr.mxu0 0.0
        %574 = vmatpush1.xpose.msra.mxu0 0.0
        %575 = vmatprep.subr.mxu0 0.0
        %576 = vmatpush1.xpose.msra.mxu0 0.0
        %577 = vmatprep.subr.mxu0 0.0
        %578 = vmatpush1.xpose.msra.mxu0 0.0
        %579 = vmatprep.subr.mxu0 0.0
        %580 = vmatpush1.xpose.msra.mxu0 0.0
        %581 = vmatprep.subr.mxu0 0.0
        %582 = vmatpush1.xpose.msra.mxu0 0.0
        %583 = vmatprep.subr.mxu0 0.0
        %584 = vmatpush1.xpose.msra.mxu0 0.0
        %585 = vmatprep.subr.mxu0 0.0
        %586 = vmatpush1.xpose.msra.mxu0 0.0
        %587 = vmatprep.subr.mxu0 0.0
        %588 = vmatpush1.xpose.msra.mxu0 0.0
        %589 = vmatprep.subr.mxu0 0.0
        %590 = vmatpush1.xpose.msra.mxu0 0.0
        %591 = vmatprep.subr.mxu0 0.0
        %592 = vmatpush1.xpose.msra.mxu0 0.0
        %593 = vmatprep.subr.mxu0 0.0
        %594 = vmatpush1.xpose.msra.mxu0 0.0
        %595 = vmatprep.subr.mxu0 0.0
        %596 = vmatpush1.xpose.msra.mxu0 0.0
        %597 = vmatprep.subr.mxu0 0.0
        %598 = vmatpush1.xpose.msra.mxu0 0.0
        %599 = vmatprep.subr.mxu0 0.0
        %600 = vmatpush1.xpose.msra.mxu0 0.0
        %601 = vmatprep.subr.mxu0 0.0
        %602 = vmatpush1.xpose.msra.mxu0 0.0
        %603 = vmatprep.subr.mxu0 0.0
        %604 = vmatpush1.xpose.msra.mxu0 0.0
        %605 = vmatprep.subr.mxu0 0.0
        %606 = vmatpush1.xpose.msra.mxu0 0.0
        %607 = vmatprep.subr.mxu0 0.0
        %608 = vmatpush1.xpose.msra.mxu0 0.0
        %609 = vmatprep.subr.mxu0 0.0
        %610 = vmatpush1.xpose.msra.mxu0 0.0
        %611 = vmatprep.subr.mxu0 0.0
        %612 = vmatpush1.xpose.msra.mxu0 0.0
        %613 = vmatprep.subr.mxu0 0.0
        %614 = vmatpush1.xpose.msra.mxu0 0.0
        %615 = vmatprep.subr.mxu0 0.0
        %616 = vmatpush1.xpose.msra.mxu0 0.0
        %617 = vmatprep.subr.mxu0 0.0
        %618 = vmatpush1.xpose.msra.mxu0 0.0
        %619 = vmatprep.subr.mxu0 0.0
        %620 = vmatpush1.xpose.msra.mxu0 0.0
        %621 = vmatprep.subr.mxu0 0.0
        %622 = vmatpush1.xpose.msra.mxu0 0.0
        %623 = vmatprep.subr.mxu0 0.0
        %624 = vmatpush1.xpose.msra.mxu0 0.0
        %625 = vmatprep.subr.mxu0 0.0
        %626 = vmatpush1.xpose.msra.mxu0 0.0
        %627 = vmatprep.subr.mxu0 0.0
        %628 = vmatpush1.xpose.msra.mxu0 0.0
        %629 = vmatprep.subr.mxu0 0.0
        %630 = vmatpush1.xpose.msra.mxu0 0.0
        %631 = vmatprep.mubr.f32.mxu0 0.0
        %632 = vmatmul.mubr.f32.gmra.mrb[0].mxu0 1.0
        %v633 = vpop.f32.mrb[0].mxu0
        %v634 = vadd.f32 0.0, %v633
        %v635 = vpop.f32.mrb[0].mxu0
        %636 = vdwg.mxu0
        %v637 = vadd.f32 %v566, %v634
        %638 = vst.msk [vmem:[#allocation7] sm:$0x1] %vm412, %v637
        %p639 = scmp.eq.s32.totalorder %s28, 1
        // Predicated region
        $region41: #{tpu_custom_call.1} parent=27 // pred_check
          %p640 = pneg %p639
        $region42: #{tpu_custom_call.1} parent=27 // pred_check_branch
          %642 = sbr.rel (%p640) target = $region44
        $region43: #{tpu_custom_call.1} parent=27 // pred_region
          %v643 = vld [vmem:[#allocation2] sm:$0xff]
          %v644 = vld [vmem:[#allocation5] sm:$0xff]
          %v645 = vld [vmem:[#allocation6] sm:$0x1]
          %647 = vset.pattern.permute.xlu0 0
          %648 = vperm.xlu0 %647, %v644
          %v649 = vpop.permute.xlu0 %648
          %v652 = vlaneseq
          %v653 = vshrl.u32 %v652, 7
          %v654 = vsub.s32 0, %v653
          %v655 = vrot.slane %v645, %v654
          %v657 = vadd.f32 %v649, %v655
          %v658 = vsub.f32 %v657, %v643
          %vm659 = vcmp.gt.f32.partialorder %v658, 0.0
          %v660 = vmax.f32 %v658, 1e-06
          %v661 = vrcp.pop %v660
          %v662 = vmul.f32 %v643, %v661
          %v663 = vsel %vm659, %v662, 0.0
          %664 = vst.msk [vmem:[#allocation13] sm:$0xff] %vm338, %v663
          %v665 = vld [vmem:[#allocation3] sm:$0xff]
          %v666 = vld [vmem:[#allocation4] sm:$0xff]
          %v667 = vsub.f32 %v665, %v666
          %v668 = vld [vmem:[#allocation7] sm:$0x1]
          %v670 = vlaneseq
          %v671 = vshrl.u32 %v670, 7
          %v672 = vsub.s32 0, %v671
          %v673 = vrot.slane %v668, %v672
          %v675 = vadd.f32 %v667, %v673
          %v676 = vsub.f32 0.0, %v675
          %v677 = vmul.f32 %v676, 0.00390625
          %678 = vst.msk [vmem:[#allocation14] sm:$0xff] %vm338, %v677
        $region44: #{tpu_custom_call.1} parent=27 // pred_fallthru
          _
        // Predicated region
        $region45: #{tpu_custom_call.1} parent=27 // pred_check
          %p679 = pneg %p109
        $region46: #{tpu_custom_call.1} parent=27 // pred_check_branch
          %681 = sbr.rel (%p679) target = $region48
        $region47: #{tpu_custom_call.1} parent=27 // pred_region
          %s683 = ssub.s32 128, 128
          %684 = vsyncadd [#allocation10], %s683
          %s685 = smul.addr %s27, 128
          %s686 = scalar_lea.hbm %s2, %s685
          %s688 = sshll.u32 [#allocation13], 4
          %s689 = int_to_ptr.vmem [resolvable:$true] %s688
          %691 = dma.vmem_to_hbm [thread:$0]  %s689, 128, %s686, [#allocation10]
        $region48: #{tpu_custom_call.1} parent=27 // pred_fallthru
          _
        // Predicated region
        $region49: #{tpu_custom_call.1} parent=27 // pred_check
          %p692 = pneg %p135
        $region50: #{tpu_custom_call.1} parent=27 // pred_check_branch
          %694 = sbr.rel (%p692) target = $region52
        $region51: #{tpu_custom_call.1} parent=27 // pred_region
          %s696 = ssub.s32 128, 128
          %697 = vsyncadd [#allocation15], %s696
          %s698 = smul.addr %s27, 128
          %s699 = scalar_lea.hbm %s3, %s698
          %s701 = sshll.u32 [#allocation14], 4
          %s702 = int_to_ptr.vmem [resolvable:$true] %s701
          %704 = dma.vmem_to_hbm [thread:$0]  %s702, 128, %s699, [#allocation15]
        $region52: #{tpu_custom_call.1} parent=27 // pred_fallthru
          _
        // Predicated region
        $region53: #{tpu_custom_call.1} parent=27 // pred_check
          %p705 = pneg %p109
        $region54: #{tpu_custom_call.1} parent=27 // pred_check_branch
          %707 = sbr.rel (%p705) target = $region56
        $region55: #{tpu_custom_call.1} parent=27 // pred_region
          %708 = dma.done [#allocation10], 128
        $region56: #{tpu_custom_call.1} parent=27 // pred_fallthru
          _
        // Predicated region
        $region57: #{tpu_custom_call.1} parent=27 // pred_check
          %p709 = pneg %p135
        $region58: #{tpu_custom_call.1} parent=27 // pred_check_branch
          %711 = sbr.rel (%p709) target = $region60
        $region59: #{tpu_custom_call.1} parent=27 // pred_region
          %712 = dma.done [#allocation15], 128
        $region60: #{tpu_custom_call.1} parent=27 // pred_fallthru
          _
      $region28: #{tpu_custom_call.1} parent=5 // pred_fallthru
        _
      %p713 = scmp.le.s32.totalorder 2, %s18
      // Predicated region
      $region61: #{tpu_custom_call.1} parent=5 // pred_check
        %p714 = pneg %p713
      $region62: #{tpu_custom_call.1} parent=5 // pred_check_branch
        %716 = sbr.rel (%p714) target = $region64
      $region63: #{tpu_custom_call.1} parent=5 // pred_region
        %s717 = ssub.s32 %s18, 2
      $region64: #{tpu_custom_call.1} parent=5 // pred_fallthru
        _
    $region6: #{tpu_custom_call.1} parent=1 // loop_footer
      %s22 = sadd.s32 1, %s18
    $region7: #{tpu_custom_call.1} parent=1 // loop_footer_branch
      %17 = sbr.rel target = $region3
    $region8: #{tpu_custom_call.1} parent=1 // loop_exit
      _
    %718 = vsyncpa [#allocation9], 1
    %s719 = scalar_lea.sflag [#allocation9], 1
    %720 = vsyncpa %s719, 1
    %721 = vsyncpa [#allocation12], 1
    %s722 = scalar_lea.sflag [#allocation12], 1
    %723 = vsyncpa %s722, 1
    %724 = vsyncpa [#allocation10], 1
    %s725 = scalar_lea.sflag [#allocation10], 1
    %726 = vsyncpa %s725, 1
    %727 = vsyncpa [#allocation15], 1

</llo_original>
